<compile_context>
chip_gen: v7x
topology: tpu7x:2x2x1
jax: 0.10.0
libtpu: 0.0.40
codegen_flags: <defaults>
</compile_context>

<pallas_src>
import functools
import math
from typing import NamedTuple, Optional

import jax
import jax.numpy as jnp
from jax.experimental import pallas as pl
from jax.experimental.pallas import tpu as pltpu


# --------------------------------------------------------------------------
# Kernels
# --------------------------------------------------------------------------
def _lbm_kernel_bias(e1_ref, w_ref, e2t_ref, b_ref, out_ref, tmp_ref):
    # tmp = e1_tile @ W is computed once per batch tile (class-tile index
    # j == 0) and cached in VMEM scratch; reused for every class tile j of the
    # same batch tile.  Valid because j is the innermost, sequentially
    # iterated ("arbitrary") grid axis.
    @pl.when(pl.program_id(1) == 0)
    def _():
        tmp_ref[...] = jnp.dot(
            e1_ref[...], w_ref[...], preferred_element_type=jnp.float32
        ).astype(tmp_ref.dtype)

    # Standard [M,K] x [K,N] MXU contraction against the pre-transposed e2
    # tile -> no in-kernel transpose, f32 accumulation.
    scores = jnp.dot(
        tmp_ref[...], e2t_ref[...], preferred_element_type=jnp.float32
    )
    out_ref[...] = (scores + b_ref[...]).astype(out_ref.dtype)


def _lbm_kernel_nobias(e1_ref, w_ref, e2t_ref, out_ref, tmp_ref):
    @pl.when(pl.program_id(1) == 0)
    def _():
        tmp_ref[...] = jnp.dot(
            e1_ref[...], w_ref[...], preferred_element_type=jnp.float32
        ).astype(tmp_ref.dtype)

    scores = jnp.dot(
        tmp_ref[...], e2t_ref[...], preferred_element_type=jnp.float32
    )
    out_ref[...] = scores.astype(out_ref.dtype)


# --------------------------------------------------------------------------
# Tiling helpers
# --------------------------------------------------------------------------
def _round_up(x: int, m: int) -> int:
    return ((x + m - 1) // m) * m


def _cdiv(a: int, b: int) -> int:
    return (a + b - 1) // b


def _balanced_tiles(total: int, cap: int, align: int):
    """Split `total` into the fewest tiles of size <= ~cap, each a multiple of
    `align`.  Padding is at most (align - 1) per tile, which avoids the
    '257 -> 512' over-padding trap of round_up(total, tile)."""
    n = max(1, _cdiv(total, cap))
    tile = _round_up(_cdiv(total, n), align)
    return n, tile, n * tile


class LBMConfig(NamedTuple):
    l_dim: int
    r_dim: int
    n_classes: int
    Lp: int
    Rp: int
    Cp: int
    tn: int
    n_ctiles: int
    compute_dtype: str


# --------------------------------------------------------------------------
# Param preparation (call once; hoisted out of the per-forward path)
# --------------------------------------------------------------------------
def lbm_prepare(weight, e2, bias=None, *, compute_dtype=None, class_tile_cap=512):
    """Pad (and transpose e2) once.  Returns (wp, e2tp, bias2d, cfg)."""
    L, R = weight.shape
    C, R2 = e2.shape
    assert R2 == R, "e2 second dim must equal r_dim"

    cdt = jnp.dtype(compute_dtype) if compute_dtype is not None else jnp.dtype(weight.dtype)
    isz = cdt.itemsize

    Lp = _round_up(L, 128)   # MXU K of matmul 1 (lane dim of e1 / sublane of W)
    Rp = _round_up(R, 128)   # MXU N of matmul 1 / K of matmul 2

    # Lane-dense class tiles; keep the double-buffered e2 tile below ~8 MiB.
    cap_n = class_tile_cap
    while cap_n > 128 and 2 * Rp * cap_n * isz > 8 * 1024 * 1024:
        cap_n //= 2
    n_ctiles, tn, Cp = _balanced_tiles(C, cap_n, 128)

    wp = jnp.zeros((Lp, Rp), cdt).at[:L, :R].set(weight.astype(cdt))
    # One-time HBM-side transpose of e2 so the kernel's 2nd matmul needs no
    # in-kernel transpose of the class tile.
    e2tp = jnp.zeros((Rp, Cp), cdt).at[:R, :C].set(e2.T.astype(cdt))

    if bias is not None:
        bias2d = jnp.zeros((1, Cp), jnp.float32).at[0, :C].set(bias.astype(jnp.float32))
    else:
        bias2d = None

    cfg = LBMConfig(
        l_dim=L, r_dim=R, n_classes=C,
        Lp=Lp, Rp=Rp, Cp=Cp, tn=tn, n_ctiles=n_ctiles,
        compute_dtype=str(cdt),
    )
    return wp, e2tp, bias2d, cfg


# --------------------------------------------------------------------------
# Forward (per-call path: pads only e1)
# --------------------------------------------------------------------------
@functools.partial(jax.jit, static_argnames=("cfg",))
def lbm_forward_prepared(e1, wp, e2tp, bias2d, *, cfg: LBMConfig):
    B, L = e1.shape
    assert L == cfg.l_dim, "e1 second dim must equal l_dim"

    cdt = jnp.dtype(cfg.compute_dtype)
    out_dtype = e1.dtype
    isz = cdt.itemsize
    out_isz = jnp.dtype(out_dtype).itemsize
    Lp, Rp, Cp, tn, n_ctiles = cfg.Lp, cfg.Rp, cfg.Cp, cfg.tn, cfg.n_ctiles

    # Sublane alignment: (8,128) for 32-bit, (16,128) for 16-bit, (32,128) for 8-bit.
    sublane = 8 * max(1, 4 // min(isz, out_isz))

    # --- VMEM budgeting -----------------------------------------------------
    # Resident set: double-buffered W (constant index map, fetched once but
    # still allocated x2), double-buffered e2 tile, bias.
    resident = 2 * Lp * Rp * isz + 2 * Rp * tn * isz + 2 * Cp * 4
    # Per batch-row cost: double-buffered e1 + out tiles, plus tmp scratch.
    per_row = 2 * Lp * isz + 2 * tn * out_isz + Rp * isz
    # TODO(synk): single-buffer the constant-index W block (pipeline_mode=
    # pl.Buffered(1)) and R-chunk W when Lp*Rp*isz alone exceeds ~16 MiB so the
    # kernel scales to v7x's 64 MiB physical VMEM; here we only budget around it.
    budget = 48 * 1024 * 1024
    cap_m = 512
    while cap_m > 8 and resident + cap_m * per_row > budget:
        cap_m //= 2
    n_btiles, tm, Bp = _balanced_tiles(B, cap_m, sublane)
    # Give the "parallel" batch axis >= 2 tiles when there is enough work so a
    # 2-TensorCore chip (v7x) can shard it; harmless elsewhere (one extra step).
    if n_btiles == 1 and B >= 256:
        n_btiles, tm, Bp = _balanced_tiles(B, _round_up(_cdiv(B, 2), sublane), sublane)

    needed = resident + tm * per_row
    vmem_limit = int(min(128 * 1024 * 1024,
                         max(needed * 3 // 2 + (1 << 20), 8 * 1024 * 1024)))

    # Per-call padding: only e1 (W/e2/bias were padded once in lbm_prepare).
    # Zero-padding the contraction dim L is numerically exact; padded batch
    # rows only produce output rows that are sliced off below.
    e1p = jnp.zeros((Bp, Lp), cdt).at[:B, :L].set(e1.astype(cdt))

    grid = (n_btiles, n_ctiles)

    e1_spec = pl.BlockSpec((tm, Lp), lambda i, j: (i, 0))
    # Constant index map -> Pallas issues the W DMA exactly once (revisit-skip).
    w_spec = pl.BlockSpec((Lp, Rp), lambda i, j: (0, 0))
    e2_spec = pl.BlockSpec((Rp, tn), lambda i, j: (0, j))
    out_spec = pl.BlockSpec((tm, tn), lambda i, j: (i, j))

    # Honest traffic estimate: W read once; e2 re-streamed once per batch tile
    # unless there is a single class tile (then its index map is constant too).
    e2_reads = 1 if n_ctiles == 1 else n_btiles
    cost = pl.CostEstimate(
        flops=int(2 * Bp * Lp * Rp + 2 * Bp * Rp * Cp),
        transcendentals=0,
        bytes_accessed=int(
            isz * (Bp * Lp + Lp * Rp + e2_reads * Rp * Cp)
            + 4 * Cp
            + out_isz * Bp * Cp
        ),
    )
    cparams = pltpu.CompilerParams(
        # Batch tiles are independent -> "parallel" (shards across v7x's 2 TCs).
        # Class tiles reuse the cached tmp scratch (j==0 init) -> must stay
        # innermost + "arbitrary"; do NOT reorder or mark parallel.
        dimension_semantics=("parallel", "arbitrary"),
        vmem_limit_bytes=vmem_limit,
    )
    scratch_shapes = [pltpu.VMEM((tm, Rp), cdt)]   # tmp = e1_tile @ W
    out_shape = jax.ShapeDtypeStruct((Bp, Cp), out_dtype)

    if bias2d is not None:
        b_spec = pl.BlockSpec((1, tn), lambda i, j: (0, j))
        out_p = pl.pallas_call(
            _lbm_kernel_bias,
            out_shape=out_shape,
            grid=grid,
            in_specs=[e1_spec, w_spec, e2_spec, b_spec],
            out_specs=out_spec,
            scratch_shapes=scratch_shapes,
            compiler_params=cparams,
            cost_estimate=cost,
        )(e1p, wp, e2tp, bias2d)
    else:
        out_p = pl.pallas_call(
            _lbm_kernel_nobias,
            out_shape=out_shape,
            grid=grid,
            in_specs=[e1_spec, w_spec, e2_spec],
            out_specs=out_spec,
            scratch_shapes=scratch_shapes,
            compiler_params=cparams,
            cost_estimate=cost,
        )(e1p, wp, e2tp)

    return out_p[:B, :cfg.n_classes]


def lbm_forward(e1, weight, e2, bias: Optional[jax.Array] = None, *, compute_dtype=None):
    """One-shot convenience wrapper (pads everything per call).  When weight /
    e2 / bias are reused across calls, prefer lbm_prepare + lbm_forward_prepared
    so their padding/transpose is not re-materialized every forward."""
    wp, e2tp, bias2d, cfg = lbm_prepare(weight, e2, bias, compute_dtype=compute_dtype)
    return lbm_forward_prepared(e1, wp, e2tp, bias2d, cfg=cfg)


# --------------------------------------------------------------------------
# Demo / correctness check
# --------------------------------------------------------------------------
if __name__ == "__main__":
    batch, l_dim, r_dim, n_classes = 2, 32, 16, 4

    key = jax.random.PRNGKey(0)
    k_w, k_b, k_e1, k_e2 = jax.random.split(key, 4)

    # Deterministic parameter init matching nn.init.uniform_(-bound, bound).
    bound = 1.0 / math.sqrt(l_dim)
    weight = jax.random.uniform(
        k_w, (l_dim, r_dim), minval=-bound, maxval=bound, dtype=jnp.float32
    )
    bias = jax.random.uniform(
        k_b, (n_classes,), minval=-bound, maxval=bound, dtype=jnp.float32
    )
    e1 = jax.random.normal(k_e1, (batch, l_dim), dtype=jnp.float32)
    e2 = jax.random.normal(k_e2, (n_classes, r_dim), dtype=jnp.float32)

    ref = (e1 @ weight) @ e2.T + bias

    # Hoisted param preparation (pad + one-time e2 transpose) + forward.
    wp, e2tp, bias2d, cfg = lbm_prepare(weight, e2, bias)
    out = jax.block_until_ready(lbm_forward_prepared(e1, wp, e2tp, bias2d, cfg=cfg))
    assert out.shape == (batch, n_classes)
    assert out.dtype == e1.dtype
    assert jnp.allclose(out, ref, atol=1e-5, rtol=1e-5)

    # No-bias path.
    out_nb = jax.block_until_ready(lbm_forward(e1, weight, e2, None))
    ref_nb = (e1 @ weight) @ e2.T
    assert jnp.allclose(out_nb, ref_nb, atol=1e-5, rtol=1e-5)

    # Opt-in bf16 MXU path (f32 accumulation), looser tolerance.
    out_bf16 = jax.block_until_ready(
        lbm_forward(e1, weight, e2, bias, compute_dtype=jnp.bfloat16)
    )
    assert jnp.allclose(out_bf16, ref, atol=5e-2, rtol=5e-2)

    print("KERNEL_OK")
</pallas_src>

<mosaic_0001>
module attributes {stable_mosaic.version = 11 : i64} {
  func.func @_lbm_kernel_bias(%arg0: i32, %arg1: i32, %arg2: memref<8x128xf32, #tpu.memory_space<vmem>>, %arg3: memref<128x128xf32, #tpu.memory_space<vmem>>, %arg4: memref<128x128xf32, #tpu.memory_space<vmem>>, %arg5: memref<1x128xf32, #tpu.memory_space<vmem>>, %arg6: memref<8x128xf32, #tpu.memory_space<vmem>>, %arg7: memref<8x128xf32, #tpu.memory_space<vmem>>) attributes {dimension_semantics = [#tpu.dimension_semantics<parallel>, #tpu.dimension_semantics<arbitrary>], iteration_bounds = array<i64: 1, 1>, scalar_prefetch = 0 : i64, scratch_operands = 1 : i64, tpu.core_type = #tpu.core_type<tc>, window_params = [{transform_indices = @transform_0, window_bounds = array<i64: 8, 128>}, {pipeline_mode = #tpu.pipeline_mode<synchronous>, transform_indices = @transform_1, window_bounds = array<i64: 128, 128>}, {transform_indices = @transform_2, window_bounds = array<i64: 128, 128>}, {transform_indices = @transform_3, window_bounds = array<i64: 1, 128>}, {transform_indices = @transform_4, window_bounds = array<i64: 8, 128>}]} {
    %c0_i32 = arith.constant 0 : i32
    %0 = arith.cmpi eq, %arg1, %c0_i32 : i32
    %1 = arith.extui %0 : i1 to i32
    %c0_i32_0 = arith.constant 0 : i32
    %2 = arith.cmpi ne, %1, %c0_i32_0 : i32
    scf.if %2 {
      %c0_8 = arith.constant 0 : index
      %c0_9 = arith.constant 0 : index
      %10 = vector.load %arg2[%c0_8, %c0_9] : memref<8x128xf32, #tpu.memory_space<vmem>>, vector<8x128xf32>
      %c0_10 = arith.constant 0 : index
      %c0_11 = arith.constant 0 : index
      %11 = vector.load %arg3[%c0_10, %c0_11] : memref<128x128xf32, #tpu.memory_space<vmem>>, vector<128x128xf32>
      %cst_12 = arith.constant dense<0.000000e+00> : vector<8x128xf32>
      %12 = tpu.matmul %10, %11, %cst_12 {dimension_numbers = #tpu.dot_dimension_numbers<[1], [0], [0], [1], [0, 0, 1, 1], [], []>} : vector<8x128xf32>, vector<128x128xf32>, vector<8x128xf32> -> vector<8x128xf32>
      %c0_13 = arith.constant 0 : index
      %c0_14 = arith.constant 0 : index
      %13 = vector.load %arg7[%c0_13, %c0_14] : memref<8x128xf32, #tpu.memory_space<vmem>>, vector<8x128xf32>
      tpu.vector_store %arg7[%c0_13, %c0_14], %12 {strides = array<i32>} : memref<8x128xf32, #tpu.memory_space<vmem>>, vector<8x128xf32>,
    } else {
    }
    %c0 = arith.constant 0 : index
    %c0_1 = arith.constant 0 : index
    %3 = vector.load %arg7[%c0, %c0_1] : memref<8x128xf32, #tpu.memory_space<vmem>>, vector<8x128xf32>
    %c0_2 = arith.constant 0 : index
    %c0_3 = arith.constant 0 : index
    %4 = vector.load %arg4[%c0_2, %c0_3] : memref<128x128xf32, #tpu.memory_space<vmem>>, vector<128x128xf32>
    %cst = arith.constant dense<0.000000e+00> : vector<8x128xf32>
    %5 = tpu.matmul %3, %4, %cst {dimension_numbers = #tpu.dot_dimension_numbers<[1], [0], [0], [1], [0, 0, 1, 1], [], []>} : vector<8x128xf32>, vector<128x128xf32>, vector<8x128xf32> -> vector<8x128xf32>
    %c0_4 = arith.constant 0 : index
    %c0_5 = arith.constant 0 : index
    %6 = vector.load %arg5[%c0_4, %c0_5] : memref<1x128xf32, #tpu.memory_space<vmem>>, vector<1x128xf32>
    %7 = vector.broadcast %6 : vector<1x128xf32> to vector<8x128xf32>
    %8 = arith.addf %5, %7 : vector<8x128xf32>
    %c0_6 = arith.constant 0 : index
    %c0_7 = arith.constant 0 : index
    %9 = vector.load %arg6[%c0_6, %c0_7] : memref<8x128xf32, #tpu.memory_space<vmem>>, vector<8x128xf32>
    tpu.vector_store %arg6[%c0_6, %c0_7], %8 {strides = array<i32>} : memref<8x128xf32, #tpu.memory_space<vmem>>, vector<8x128xf32>,
    return
  }
  func.func @transform_0(%arg0: i32, %arg1: i32) -> (i32, i32) {
    %c0_i32 = arith.constant 0 : i32
    %c0_i32_0 = arith.constant 0 : i32
    return %arg0, %c0_i32 : i32, i32
  }
  func.func @transform_1(%arg0: i32, %arg1: i32) -> (i32, i32) {
    %c0_i32 = arith.constant 0 : i32
    %c0_i32_0 = arith.constant 0 : i32
    %c0_i32_1 = arith.constant 0 : i32
    return %c0_i32, %c0_i32_0 : i32, i32
  }
  func.func @transform_2(%arg0: i32, %arg1: i32) -> (i32, i32) {
    %c0_i32 = arith.constant 0 : i32
    %c0_i32_0 = arith.constant 0 : i32
    return %c0_i32, %arg1 : i32, i32
  }
  func.func @transform_3(%arg0: i32, %arg1: i32) -> (i32, i32) {
    %c0_i32 = arith.constant 0 : i32
    %c0_i32_0 = arith.constant 0 : i32
    return %c0_i32, %arg1 : i32, i32
  }
  func.func @transform_4(%arg0: i32, %arg1: i32) -> (i32, i32) {
    %c0_i32 = arith.constant 0 : i32
    return %arg0, %arg1 : i32, i32
  }
}

</mosaic_0001>

<llo_original>
// kernel: lbm_forward_prepared.1
$region0: #{lbm_forward_prepared.1}
  #allocation0 [shape = 'u32[]', space=smem, size = 0x4, offset = 0x4, fixed_abs, tag = 'smem constant byte address 0x4 - core index']
  #allocation1 [shape = 'u32[144,128]{1,0:T(1,128)}', space=vmem, size = 0x12000, scoped, tag = 'internal scratch']
  #allocation2 [shape = 'f32[8,128]{1,0:T(8,128)}', space=vmem, size = 0x1000, scoped, tag = 'scratch operand']
  %s0 = inlined_call_operand.vmem [shape: f32[8,128], index: 0, kind: input, shape index: {}]
  %s1 = inlined_call_operand.hbm [shape: f32[128,128], index: 1, kind: input, shape index: {}]
  %s2 = inlined_call_operand.hbm [shape: f32[128,128], index: 2, kind: input, shape index: {}]
  %s3 = inlined_call_operand.vmem [shape: f32[1,128], index: 3, kind: input, shape index: {}]
  %s4 = inlined_call_operand.vmem [shape: f32[8,128], index: 4, kind: output, shape index: {}]
  %s5 = sld [smem:[#allocation0]]
  $region38: #{lbm_forward_prepared.1} parent=0
    _
  %s7 = ssub.s32 1, %s5
  %s8 = scalar_select 0, %s7, %s5
  $region1: #{lbm_forward_prepared.1} parent=0
    #allocation3 [shape = 'u8[65536]{0}', space=vmem, size = 0x10000, scoped, tag = 'input window, operand 1, single buffered']
    #allocation4 [shape = 's32[1]{0}', space=sflag, size = 0x4, scoped, tag = 'scoped memory for lbm_forward_prepared.1']
    #allocation5 [shape = 'u8[65536]{0}', space=vmem, size = 0x10000, scoped, tag = 'input window, operand 2, single buffered']
    #allocation6 [shape = 's32[1]{0}', space=sflag, size = 0x4, scoped, tag = 'scoped memory for lbm_forward_prepared.1']
    %9 = vsyncpa [#allocation4], 0
    %10 = vsyncpa [#allocation6], 0
    // Predicated region
    $region2: #{lbm_forward_prepared.1} parent=1 // pred_check
      _
    $region3: #{lbm_forward_prepared.1} parent=1 // pred_check_branch
      %12 = sbr.rel (0) target = $region5
    $region4: #{lbm_forward_prepared.1} parent=1 // pred_region
      _
    $region5: #{lbm_forward_prepared.1} parent=1 // pred_fallthru
      _
    // Predicated region
    $region6: #{lbm_forward_prepared.1} parent=1 // pred_check
      _
    $region7: #{lbm_forward_prepared.1} parent=1 // pred_check_branch
      %14 = sbr.rel (0) target = $region9
    $region8: #{lbm_forward_prepared.1} parent=1 // pred_region
      %s16 = ssub.s32 2048, 2048
      %17 = vsyncadd [#allocation4], %s16
      %s18 = sshll.u32 [#allocation3], 4
      %s19 = int_to_ptr.vmem [resolvable:$true] %s18
      %24 = dma.hbm_to_vmem [thread:$0]  %s1, 2048, %s19, [#allocation4], 128, 128, 8
    $region9: #{lbm_forward_prepared.1} parent=1 // pred_fallthru
      _
    // Predicated region
    $region10: #{lbm_forward_prepared.1} parent=1 // pred_check
      _
    $region11: #{lbm_forward_prepared.1} parent=1 // pred_check_branch
      %26 = sbr.rel (0) target = $region13
    $region12: #{lbm_forward_prepared.1} parent=1 // pred_region
      %s28 = ssub.s32 2048, 2048
      %29 = vsyncadd [#allocation6], %s28
      %s30 = sshll.u32 [#allocation5], 4
      %s31 = int_to_ptr.vmem [resolvable:$true] %s30
      %36 = dma.hbm_to_vmem [thread:$0]  %s2, 2048, %s31, [#allocation6], 128, 128, 8
    $region13: #{lbm_forward_prepared.1} parent=1 // pred_fallthru
      _
    // Predicated region
    $region14: #{lbm_forward_prepared.1} parent=1 // pred_check
      _
    $region15: #{lbm_forward_prepared.1} parent=1 // pred_check_branch
      %38 = sbr.rel (0) target = $region17
    $region16: #{lbm_forward_prepared.1} parent=1 // pred_region
      _
    $region17: #{lbm_forward_prepared.1} parent=1 // pred_fallthru
      _
    // Predicated region
    $region18: #{lbm_forward_prepared.1} parent=1 // pred_check
      _
    $region19: #{lbm_forward_prepared.1} parent=1 // pred_check_branch
      %40 = sbr.rel (0) target = $region21
    $region20: #{lbm_forward_prepared.1} parent=1 // pred_region
      %41 = dma.done [#allocation4], 2048
    $region21: #{lbm_forward_prepared.1} parent=1 // pred_fallthru
      _
    // Predicated region
    $region22: #{lbm_forward_prepared.1} parent=1 // pred_check
      _
    $region23: #{lbm_forward_prepared.1} parent=1 // pred_check_branch
      %43 = sbr.rel (0) target = $region25
    $region24: #{lbm_forward_prepared.1} parent=1 // pred_region
      %44 = dma.done [#allocation6], 2048
    $region25: #{lbm_forward_prepared.1} parent=1 // pred_fallthru
      _
    %p45 = scmp.eq.s32.totalorder 0, 0
    // Predicated region
    $region26: #{lbm_forward_prepared.1} parent=1 // pred_check
      %p46 = pneg %p45
    $region27: #{lbm_forward_prepared.1} parent=1 // pred_check_branch
      %48 = sbr.rel (%p46) target = $region29
    $region28: #{lbm_forward_prepared.1} parent=1 // pred_region
      %v49 = vld [vmem:[%s0] sm:$0xff]
      %v50 = vld [vmem:[#allocation3] sm:$0xff]
      %v51 = vld [vmem:[#allocation3 + $0x8] sm:$0xff]
      %v52 = vld [vmem:[#allocation3 + $0x10] sm:$0xff]
      %v53 = vld [vmem:[#allocation3 + $0x18] sm:$0xff]
      %v54 = vld [vmem:[#allocation3 + $0x20] sm:$0xff]
      %v55 = vld [vmem:[#allocation3 + $0x28] sm:$0xff]
      %v56 = vld [vmem:[#allocation3 + $0x30] sm:$0xff]
      %v57 = vld [vmem:[#allocation3 + $0x38] sm:$0xff]
      %v58 = vld [vmem:[#allocation3 + $0x40] sm:$0xff]
      %v59 = vld [vmem:[#allocation3 + $0x48] sm:$0xff]
      %v60 = vld [vmem:[#allocation3 + $0x50] sm:$0xff]
      %v61 = vld [vmem:[#allocation3 + $0x58] sm:$0xff]
      %v62 = vld [vmem:[#allocation3 + $0x60] sm:$0xff]
      %v63 = vld [vmem:[#allocation3 + $0x68] sm:$0xff]
      %v64 = vld [vmem:[#allocation3 + $0x70] sm:$0xff]
      %v65 = vld [vmem:[#allocation3 + $0x78] sm:$0xff]
      %66 = vmatprep.subr.mxu0 0.0
      %67 = vmatpush1.msra.mxu0 %v50
      %68 = vmatprep.subr.mxu0 0.0
      %69 = vmatpush1.msra.mxu0 %v51
      %70 = vmatprep.subr.mxu0 0.0
      %71 = vmatpush1.msra.mxu0 %v52
      %72 = vmatprep.subr.mxu0 0.0
      %73 = vmatpush1.msra.mxu0 %v53
      %74 = vmatprep.subr.mxu0 0.0
      %75 = vmatpush1.msra.mxu0 %v54
      %76 = vmatprep.subr.mxu0 0.0
      %77 = vmatpush1.msra.mxu0 %v55
      %78 = vmatprep.subr.mxu0 0.0
      %79 = vmatpush1.msra.mxu0 %v56
      %80 = vmatprep.subr.mxu0 0.0
      %81 = vmatpush1.msra.mxu0 %v57
      %82 = vmatprep.subr.mxu0 0.0
      %83 = vmatpush1.msra.mxu0 %v58
      %84 = vmatprep.subr.mxu0 0.0
      %85 = vmatpush1.msra.mxu0 %v59
      %86 = vmatprep.subr.mxu0 0.0
      %87 = vmatpush1.msra.mxu0 %v60
      %88 = vmatprep.subr.mxu0 0.0
      %89 = vmatpush1.msra.mxu0 %v61
      %90 = vmatprep.subr.mxu0 0.0
      %91 = vmatpush1.msra.mxu0 %v62
      %92 = vmatprep.subr.mxu0 0.0
      %93 = vmatpush1.msra.mxu0 %v63
      %94 = vmatprep.subr.mxu0 0.0
      %95 = vmatpush1.msra.mxu0 %v64
      %96 = vmatprep.subr.mxu0 0.0
      %97 = vmatpush1.msra.mxu0 %v65
      %98 = vmatprep.subr.mxu0 0.0
      %99 = vmatpush1.msra.mxu0 0.0
      %100 = vmatprep.subr.mxu0 0.0
      %101 = vmatpush1.msra.mxu0 0.0
      %102 = vmatprep.subr.mxu0 0.0
      %103 = vmatpush1.msra.mxu0 0.0
      %104 = vmatprep.subr.mxu0 0.0
      %105 = vmatpush1.msra.mxu0 0.0
      %106 = vmatprep.subr.mxu0 0.0
      %107 = vmatpush1.msra.mxu0 0.0
      %108 = vmatprep.subr.mxu0 0.0
      %109 = vmatpush1.msra.mxu0 0.0
      %110 = vmatprep.subr.mxu0 0.0
      %111 = vmatpush1.msra.mxu0 0.0
      %112 = vmatprep.subr.mxu0 0.0
      %113 = vmatpush1.msra.mxu0 0.0
      %114 = vmatprep.subr.mxu0 0.0
      %115 = vmatpush1.msra.mxu0 0.0
      %116 = vmatprep.subr.mxu0 0.0
      %117 = vmatpush1.msra.mxu0 0.0
      %118 = vmatprep.subr.mxu0 0.0
      %119 = vmatpush1.msra.mxu0 0.0
      %120 = vmatprep.subr.mxu0 0.0
      %121 = vmatpush1.msra.mxu0 0.0
      %122 = vmatprep.subr.mxu0 0.0
      %123 = vmatpush1.msra.mxu0 0.0
      %124 = vmatprep.subr.mxu0 0.0
      %125 = vmatpush1.msra.mxu0 0.0
      %126 = vmatprep.subr.mxu0 0.0
      %127 = vmatpush1.msra.mxu0 0.0
      %128 = vmatprep.subr.mxu0 0.0
      %129 = vmatpush1.msra.mxu0 0.0
      %130 = vmatprep.mubr.f32.mxu0 0.0
      %131 = vmatmul.mubr.f32.gmra.mrb[0].mxu0 %v49
      %v132 = vpop.f32.mrb[0].mxu0
      %v133 = vadd.f32 0.0, %v132
      %v134 = vpop.f32.mrb[0].mxu0
      %135 = vdwg.mxu0
      %136 = vst [vmem:[#allocation2] sm:$0xff] %v133
    $region29: #{lbm_forward_prepared.1} parent=1 // pred_fallthru
      _
    %v137 = vld [vmem:[#allocation2] sm:$0xff]
    %v138 = vld [vmem:[#allocation5] sm:$0xff]
    %v139 = vld [vmem:[#allocation5 + $0x8] sm:$0xff]
    %v140 = vld [vmem:[#allocation5 + $0x10] sm:$0xff]
    %v141 = vld [vmem:[#allocation5 + $0x18] sm:$0xff]
    %v142 = vld [vmem:[#allocation5 + $0x20] sm:$0xff]
    %v143 = vld [vmem:[#allocation5 + $0x28] sm:$0xff]
    %v144 = vld [vmem:[#allocation5 + $0x30] sm:$0xff]
    %v145 = vld [vmem:[#allocation5 + $0x38] sm:$0xff]
    %v146 = vld [vmem:[#allocation5 + $0x40] sm:$0xff]
    %v147 = vld [vmem:[#allocation5 + $0x48] sm:$0xff]
    %v148 = vld [vmem:[#allocation5 + $0x50] sm:$0xff]
    %v149 = vld [vmem:[#allocation5 + $0x58] sm:$0xff]
    %v150 = vld [vmem:[#allocation5 + $0x60] sm:$0xff]
    %v151 = vld [vmem:[#allocation5 + $0x68] sm:$0xff]
    %v152 = vld [vmem:[#allocation5 + $0x70] sm:$0xff]
    %v153 = vld [vmem:[#allocation5 + $0x78] sm:$0xff]
    %v154 = vld [vmem:[%s3] sm:$0x1]
    %v156 = vlaneseq
    %v157 = vshrl.u32 %v156, 7
    %v158 = vsub.s32 0, %v157
    %v159 = vrot.slane %v154, %v158
    %161 = vmatprep.subr.mxu0 0.0
    %162 = vmatpush1.msra.mxu0 %v138
    %163 = vmatprep.subr.mxu0 0.0
    %164 = vmatpush1.msra.mxu0 %v139
    %165 = vmatprep.subr.mxu0 0.0
    %166 = vmatpush1.msra.mxu0 %v140
    %167 = vmatprep.subr.mxu0 0.0
    %168 = vmatpush1.msra.mxu0 %v141
    %169 = vmatprep.subr.mxu0 0.0
    %170 = vmatpush1.msra.mxu0 %v142
    %171 = vmatprep.subr.mxu0 0.0
    %172 = vmatpush1.msra.mxu0 %v143
    %173 = vmatprep.subr.mxu0 0.0
    %174 = vmatpush1.msra.mxu0 %v144
    %175 = vmatprep.subr.mxu0 0.0
    %176 = vmatpush1.msra.mxu0 %v145
    %177 = vmatprep.subr.mxu0 0.0
    %178 = vmatpush1.msra.mxu0 %v146
    %179 = vmatprep.subr.mxu0 0.0
    %180 = vmatpush1.msra.mxu0 %v147
    %181 = vmatprep.subr.mxu0 0.0
    %182 = vmatpush1.msra.mxu0 %v148
    %183 = vmatprep.subr.mxu0 0.0
    %184 = vmatpush1.msra.mxu0 %v149
    %185 = vmatprep.subr.mxu0 0.0
    %186 = vmatpush1.msra.mxu0 %v150
    %187 = vmatprep.subr.mxu0 0.0
    %188 = vmatpush1.msra.mxu0 %v151
    %189 = vmatprep.subr.mxu0 0.0
    %190 = vmatpush1.msra.mxu0 %v152
    %191 = vmatprep.subr.mxu0 0.0
    %192 = vmatpush1.msra.mxu0 %v153
    %193 = vmatprep.subr.mxu0 0.0
    %194 = vmatpush1.msra.mxu0 0.0
    %195 = vmatprep.subr.mxu0 0.0
    %196 = vmatpush1.msra.mxu0 0.0
    %197 = vmatprep.subr.mxu0 0.0
    %198 = vmatpush1.msra.mxu0 0.0
    %199 = vmatprep.subr.mxu0 0.0
    %200 = vmatpush1.msra.mxu0 0.0
    %201 = vmatprep.subr.mxu0 0.0
    %202 = vmatpush1.msra.mxu0 0.0
    %203 = vmatprep.subr.mxu0 0.0
    %204 = vmatpush1.msra.mxu0 0.0
    %205 = vmatprep.subr.mxu0 0.0
    %206 = vmatpush1.msra.mxu0 0.0
    %207 = vmatprep.subr.mxu0 0.0
    %208 = vmatpush1.msra.mxu0 0.0
    %209 = vmatprep.subr.mxu0 0.0
    %210 = vmatpush1.msra.mxu0 0.0
    %211 = vmatprep.subr.mxu0 0.0
    %212 = vmatpush1.msra.mxu0 0.0
    %213 = vmatprep.subr.mxu0 0.0
    %214 = vmatpush1.msra.mxu0 0.0
    %215 = vmatprep.subr.mxu0 0.0
    %216 = vmatpush1.msra.mxu0 0.0
    %217 = vmatprep.subr.mxu0 0.0
    %218 = vmatpush1.msra.mxu0 0.0
    %219 = vmatprep.subr.mxu0 0.0
    %220 = vmatpush1.msra.mxu0 0.0
    %221 = vmatprep.subr.mxu0 0.0
    %222 = vmatpush1.msra.mxu0 0.0
    %223 = vmatprep.subr.mxu0 0.0
    %224 = vmatpush1.msra.mxu0 0.0
    %225 = vmatprep.mubr.f32.mxu0 0.0
    %226 = vmatmul.mubr.f32.gmra.mrb[0].mxu0 %v137
    %v227 = vpop.f32.mrb[0].mxu0
    %v228 = vadd.f32 %v159, %v227
    %v229 = vpop.f32.mrb[0].mxu0
    %230 = vdwg.mxu0
    %231 = vst [vmem:[%s4] sm:$0xff] %v228
    // Predicated region
    $region30: #{lbm_forward_prepared.1} parent=1 // pred_check
      _
    $region31: #{lbm_forward_prepared.1} parent=1 // pred_check_branch
      %233 = sbr.rel (0) target = $region33
    $region32: #{lbm_forward_prepared.1} parent=1 // pred_region
      _
    $region33: #{lbm_forward_prepared.1} parent=1 // pred_fallthru
      _
    // Predicated region
    $region34: #{lbm_forward_prepared.1} parent=1 // pred_check
      _
    $region35: #{lbm_forward_prepared.1} parent=1 // pred_check_branch
      %235 = sbr.rel (0) target = $region37
    $region36: #{lbm_forward_prepared.1} parent=1 // pred_region
      _
    $region37: #{lbm_forward_prepared.1} parent=1 // pred_fallthru
      _
    %236 = vsyncpa [#allocation4], 1
    %237 = vsyncpa [#allocation6], 1

</llo_original>
